<compile_context>
chip_gen: v5e
topology: v5e:2x2
jax: 0.10.0
libtpu: 0.0.40
codegen_flags: <defaults>
</compile_context>

<pallas_src>
import math
import jax
import jax.numpy as jnp
from jax.experimental import pallas as pl
from jax.experimental.pallas import tpu as pltpu


# -----------------------------------------------------------------------------
# Fast path: DMA-only split (used when the split row `k` is sublane-aligned).
#
# x, ks, js all stay in HBM (memory_space=pl.ANY); the kernel issues two
# overlapped HBM->HBM async copies.  No VMEM staging, no vld/vst slot traffic,
# no pipeline overhead -- the copy runs at HBM bandwidth on v5e/v6e/v7x with
# near-zero VMEM footprint (per the performance review).
# -----------------------------------------------------------------------------
def _split_dma_kernel(x_ref, ks_ref, js_ref, sem):
    k = ks_ref.shape[0]
    j = js_ref.shape[0]
    head = pltpu.make_async_copy(x_ref.at[pl.ds(0, k), :], ks_ref, sem.at[0])
    tail = pltpu.make_async_copy(x_ref.at[pl.ds(k, j), :], js_ref, sem.at[1])
    head.start()
    tail.start()
    head.wait()
    tail.wait()


def _split_dma(x, k):
    m, n = x.shape
    return pl.pallas_call(
        _split_dma_kernel,
        out_shape=(
            jax.ShapeDtypeStruct((k, n), x.dtype),
            jax.ShapeDtypeStruct((m - k, n), x.dtype),
        ),
        in_specs=[pl.BlockSpec(memory_space=pl.ANY)],
        out_specs=(
            pl.BlockSpec(memory_space=pl.ANY),
            pl.BlockSpec(memory_space=pl.ANY),
        ),
        scratch_shapes=[pltpu.SemaphoreType.DMA((2,))],
    )(x)


# -----------------------------------------------------------------------------
# Fallback path: VMEM copy kernel for a ragged split row (k % sublane != 0).
# Tiled over the lane (column) dimension so VMEM residency is bounded and the
# column tiles can be sharded across v7x's two TensorCores ("parallel").
# -----------------------------------------------------------------------------
def _split_vmem_kernel(x_ref, ks_ref, js_ref):
    k = ks_ref.shape[0]
    # Static slices of the VMEM block.  The `x_ref[k:, :]` slice starts at an
    # unaligned sublane row when k % 8 != 0 (sublane rotate on the XLU); this
    # path is only taken for ragged k, where that shift is unavoidable without
    # a separate head/tail epilogue.
    ks_ref[...] = x_ref[:k, :]
    js_ref[...] = x_ref[k:, :]


def _col_tile(n):
    # Lane-dense column tile: a multiple of 128 when possible, capped at 512
    # columns so (x + ks + js) double-buffered stays well inside the default
    # scoped-VMEM limits (16 MiB v5e / 32 MiB v6e-v7x) and v7x's 64 MiB VMEM.
    if n % 128 != 0:
        return n                 # block == full dim is always a legal BlockSpec
    return math.gcd(n, 512)      # 128, 256 or 512, always divides n


def _split_vmem(x, k):
    m, n = x.shape
    tn = _col_tile(n)
    return pl.pallas_call(
        _split_vmem_kernel,
        out_shape=(
            jax.ShapeDtypeStruct((k, n), x.dtype),
            jax.ShapeDtypeStruct((m - k, n), x.dtype),
        ),
        grid=(n // tn,),
        in_specs=[pl.BlockSpec((m, tn), lambda j: (0, j))],
        out_specs=(
            pl.BlockSpec((k, tn), lambda j: (0, j)),
            pl.BlockSpec((m - k, tn), lambda j: (0, j)),
        ),
        compiler_params=pltpu.CompilerParams(
            dimension_semantics=("parallel",),  # column tiles are independent
        ),
    )(x)


def net_forward(x, n, k):
    """Pallas implementation of Net(n, k).forward(x): ks, js = x[:k], x[k:]."""
    assert x.ndim == 2 and x.shape[1] == n, f"expected x of shape (M, {n}), got {x.shape}"
    m = x.shape[0]
    assert 0 <= k <= m

    # Degenerate splits: a zero-row output block is not a well-formed Pallas
    # block, so handle them in the wrapper (per review) without a pallas_call.
    if k == 0:
        return x[:0, :], x
    if k == m:
        return x, x[m:, :]

    # `k` is a static constructor argument of the PyTorch module, so it is
    # baked in at trace time (one compile per (shape, k), as expected).
    # TODO(synk): if k must vary at runtime without recompiling, pass it as a
    # scalar-prefetch argument and drive the DMA offsets from SMEM.
    sublane = 8 * max(1, 4 // jnp.dtype(x.dtype).itemsize)
    if k % sublane == 0:
        return _split_dma(x, k)          # tile-aligned: pure HBM->HBM DMA split

    # Ragged split row: column-tiled VMEM copy kernel.
    # TODO(synk): for very large ragged inputs, add row tiling with an aligned
    # DMA body plus a small head/tail epilogue instead of full-height blocks.
    return _split_vmem(x, k)


if __name__ == "__main__":
    key = jax.random.PRNGKey(0)

    # Case 1: aligned split -> DMA-only fast path (lane-dense n, k % 8 == 0).
    M1, N1, K1 = 16, 128, 8
    x1 = jax.random.normal(key, (M1, N1), dtype=jnp.float32)
    ks1, js1 = net_forward(x1, n=N1, k=K1)

    # Case 2: ragged split row -> VMEM fallback path.
    M2, N2, K2 = 16, 128, 5
    x2 = jax.random.normal(jax.random.fold_in(key, 1), (M2, N2), dtype=jnp.float32)
    ks2, js2 = net_forward(x2, n=N2, k=K2)

    # Case 3: degenerate split handled in the wrapper (no pallas_call).
    ks3, js3 = net_forward(x1, n=N1, k=0)

    jax.block_until_ready((ks1, js1, ks2, js2, ks3, js3))

    # Correctness checks against plain slicing (the reference semantics).
    assert ks1.shape == (K1, N1) and js1.shape == (M1 - K1, N1)
    assert jnp.array_equal(ks1, x1[:K1, :]) and jnp.array_equal(js1, x1[K1:, :])
    assert ks2.shape == (K2, N2) and js2.shape == (M2 - K2, N2)
    assert jnp.array_equal(ks2, x2[:K2, :]) and jnp.array_equal(js2, x2[K2:, :])
    assert ks3.shape == (0, N1) and jnp.array_equal(js3, x1)

    print("KERNEL_OK")
</pallas_src>

<mosaic_0001>
module attributes {stable_mosaic.version = 11 : i64} {
  func.func @_split_dma_kernel(%arg0: memref<16x128xf32, #tpu.memory_space<any>>, %arg1: memref<8x128xf32, #tpu.memory_space<any>>, %arg2: memref<8x128xf32, #tpu.memory_space<any>>, %arg3: memref<2x!tpu.dma_semaphore, #tpu.memory_space<semaphore_mem>>) attributes {dimension_semantics = [], scalar_prefetch = 0 : i64, scratch_operands = 1 : i64, tpu.core_type = #tpu.core_type<tc>} {
    %c0_i32 = arith.constant 0 : i32
    %c0_i32_0 = arith.constant 0 : i32
    %c0_i32_1 = arith.constant 0 : i32
    %0 = tpu.memref_slice %arg0[%c0_i32_0, %c0_i32_1] : memref<16x128xf32, #tpu.memory_space<any>> -> memref<8x128xf32, #tpu.memory_space<any>>
    %1 = tpu.memref_slice %arg3[%c0_i32] : memref<2x!tpu.dma_semaphore, #tpu.memory_space<semaphore_mem>> -> memref<1x!tpu.dma_semaphore, #tpu.memory_space<semaphore_mem>>
    %2 = tpu.memref_squeeze %1 : memref<1x!tpu.dma_semaphore, #tpu.memory_space<semaphore_mem>> -> memref<!tpu.dma_semaphore, #tpu.memory_space<semaphore_mem>>
    tpu.enqueue_dma source(%0 : memref<8x128xf32, #tpu.memory_space<any>>) target(%arg1 : memref<8x128xf32, #tpu.memory_space<any>>) target_semaphore(%2 : memref<!tpu.dma_semaphore, #tpu.memory_space<semaphore_mem>>)
    %c1_i32 = arith.constant 1 : i32
    %c8_i32 = arith.constant 8 : i32
    %c0_i32_2 = arith.constant 0 : i32
    %3 = tpu.memref_slice %arg0[%c8_i32, %c0_i32_2] : memref<16x128xf32, #tpu.memory_space<any>> -> memref<8x128xf32, #tpu.memory_space<any>>
    %4 = tpu.memref_slice %arg3[%c1_i32] : memref<2x!tpu.dma_semaphore, #tpu.memory_space<semaphore_mem>> -> memref<1x!tpu.dma_semaphore, #tpu.memory_space<semaphore_mem>>
    %5 = tpu.memref_squeeze %4 : memref<1x!tpu.dma_semaphore, #tpu.memory_space<semaphore_mem>> -> memref<!tpu.dma_semaphore, #tpu.memory_space<semaphore_mem>>
    tpu.enqueue_dma source(%3 : memref<8x128xf32, #tpu.memory_space<any>>) target(%arg2 : memref<8x128xf32, #tpu.memory_space<any>>) target_semaphore(%5 : memref<!tpu.dma_semaphore, #tpu.memory_space<semaphore_mem>>)
    %c0_i32_3 = arith.constant 0 : i32
    %c0_i32_4 = arith.constant 0 : i32
    %c0_i32_5 = arith.constant 0 : i32
    %6 = tpu.memref_slice %arg0[%c0_i32_4, %c0_i32_5] : memref<16x128xf32, #tpu.memory_space<any>> -> memref<8x128xf32, #tpu.memory_space<any>>
    %7 = tpu.memref_slice %arg3[%c0_i32_3] : memref<2x!tpu.dma_semaphore, #tpu.memory_space<semaphore_mem>> -> memref<1x!tpu.dma_semaphore, #tpu.memory_space<semaphore_mem>>
    %8 = tpu.memref_squeeze %7 : memref<1x!tpu.dma_semaphore, #tpu.memory_space<semaphore_mem>> -> memref<!tpu.dma_semaphore, #tpu.memory_space<semaphore_mem>>
    tpu.wait_dma2 semaphore(%8 : memref<!tpu.dma_semaphore, #tpu.memory_space<semaphore_mem>>) src(%6 : memref<8x128xf32, #tpu.memory_space<any>>) dst(%arg1 : memref<8x128xf32, #tpu.memory_space<any>>)
    %c1_i32_6 = arith.constant 1 : i32
    %c8_i32_7 = arith.constant 8 : i32
    %c0_i32_8 = arith.constant 0 : i32
    %9 = tpu.memref_slice %arg0[%c8_i32_7, %c0_i32_8] : memref<16x128xf32, #tpu.memory_space<any>> -> memref<8x128xf32, #tpu.memory_space<any>>
    %10 = tpu.memref_slice %arg3[%c1_i32_6] : memref<2x!tpu.dma_semaphore, #tpu.memory_space<semaphore_mem>> -> memref<1x!tpu.dma_semaphore, #tpu.memory_space<semaphore_mem>>
    %11 = tpu.memref_squeeze %10 : memref<1x!tpu.dma_semaphore, #tpu.memory_space<semaphore_mem>> -> memref<!tpu.dma_semaphore, #tpu.memory_space<semaphore_mem>>
    tpu.wait_dma2 semaphore(%11 : memref<!tpu.dma_semaphore, #tpu.memory_space<semaphore_mem>>) src(%9 : memref<8x128xf32, #tpu.memory_space<any>>) dst(%arg2 : memref<8x128xf32, #tpu.memory_space<any>>)
    return
  }
}

</mosaic_0001>

<llo_original>
// kernel: tpu_custom_call.1
$region0: #{tpu_custom_call.1}
  #allocation0 [shape = 'u32[]', space=smem, size = 0x4, offset = 0x4, fixed_abs, tag = 'smem constant byte address 0x4 - core index']
  #allocation1 [shape = 'u32[72,128]{1,0:T(1,128)}', space=vmem, size = 0x9000, scoped, tag = 'internal scratch']
  #allocation2 [shape = 's32[2]{0}', space=sflag, size = 0x8, scoped, tag = 'scratch operand']
  #allocation3 [shape = 's32[]', space=sflag, size = 0x4, offset = 0, fixed_abs, tag = 'sflag constant byte address 0x0 - dummy sync flag']
  #allocation4 [shape = 'u32[0]{0}', space=smem, size = 0, offset = 0, fixed_abs, tag = 'smem constant byte address 0x0 - null']
  #allocation5 [shape = 's32[]', space=sflag, size = 0x4, offset = 0, fixed_abs, tag = 'sflag constant byte address 0x0 - dummy sync flag']
  #allocation6 [shape = 'u32[0]{0}', space=smem, size = 0, offset = 0, fixed_abs, tag = 'smem constant byte address 0x0 - null']
  %s0 = inlined_call_operand.hbm [shape: f32[16,128], index: 0, kind: input, shape index: {}]
  %s1 = inlined_call_operand.hbm [shape: f32[8,128], index: 1, kind: output, shape index: {0}]
  %s2 = inlined_call_operand.hbm [shape: f32[8,128], index: 2, kind: output, shape index: {1}]
  %3 = xla_tuple %s1, %s2
  %s4 = sld [smem:[#allocation0]]
  $region2: #{tpu_custom_call.1} parent=0
    _
  %s6 = ssub.s32 1, %s4
  %s7 = scalar_select 0, %s6, %s4
  %s9 = sshll.u32 1, 14
  %s10 = sxor.u32 4294967295, %s9
  %s12 = sshll.u32 %s0, 4
  %s13 = int_to_ptr.hbm [resolvable:$true] %s12
  %s14 = sshll.u32 %s1, 4
  %s15 = int_to_ptr.hbm [resolvable:$true] %s14
  %18 = dma.general %s13, 128, %s15, [#allocation2], [#allocation3], [#allocation4], 0, 0
  %s19 = scalar_lea.hbm %s0, 8
  %s20 = scalar_lea.sflag [#allocation2], 1
  %s22 = sshll.u32 1, 14
  %s23 = sxor.u32 4294967295, %s22
  %s25 = sshll.u32 %s19, 4
  %s26 = int_to_ptr.hbm [resolvable:$true] %s25
  %s27 = sshll.u32 %s2, 4
  %s28 = int_to_ptr.hbm [resolvable:$true] %s27
  %31 = dma.general %s26, 128, %s28, %s20, [#allocation5], [#allocation6], 0, 0
  %s32 = smul.u32 8, 1
  %s33 = sshll.u32 %s32, 4
  %34 = dma.done [#allocation2], %s33
  %s35 = sshll.u32 %s32, 4
  %36 = dma.done %s20, %s35
  %37 = vsyncmov [#allocation2]
  %s38 = vpop.sfrf %37
  %p39 = scmp.eq.s32.totalorder %s38, 0
  %p40 = pneg %p39
  %42 = shalt.err (%p40)
  %s43 = scalar_lea.sflag [#allocation2], 1
  %44 = vsyncmov %s43
  %s45 = vpop.sfrf %44
  %p46 = scmp.eq.s32.totalorder %s45, 0
  %p47 = pneg %p46
  %49 = shalt.err (%p47)

</llo_original>
